<compile_context>
chip_gen: v7x
topology: tpu7x:2x2x1
jax: 0.10.0
libtpu: 0.0.40
codegen_flags: <defaults>
</compile_context>

<pallas_src>
import functools

import jax
import jax.numpy as jnp
from jax.experimental import pallas as pl
from jax.experimental.pallas import tpu as pltpu


def _round_up(x, m):
    return ((x + m - 1) // m) * m


def mlm_head_kernel(x_ref, w_ref, y_ref,
                    logits_ref, loss_ref, valid_ref,
                    m_scr, l_scr, tgt_scr,
                    *, vocab_size, tv):
    """Grid = (token tiles, vocab tiles); vocab axis is the (inner) reduction.

    x_ref:      (TN, E)   bfloat16
    w_ref:      (E,  TV)  bfloat16   (vocab block v)
    y_ref:      (TN, 1)   int32
    logits_ref: (TN, TV)  float32    output tile
    loss_ref:   (TN, 1)   float32    per-token loss * valid (written on last v)
    valid_ref:  (TN, 1)   float32    per-token valid mask   (written on last v)
    m_scr/l_scr/tgt_scr: (TN, 1) f32 online-softmax state (running max, running
                         sum of exp, accumulated target logit).
    """
    v = pl.program_id(1)
    nv = pl.num_programs(1)

    @pl.when(v == 0)
    def _init():
        m_scr[...] = jnp.full_like(m_scr, -jnp.inf)
        l_scr[...] = jnp.zeros_like(l_scr)
        tgt_scr[...] = jnp.zeros_like(tgt_scr)

    # Hot path: MXU matmul, bf16 inputs, f32 accumulation.
    logits = jnp.dot(x_ref[...], w_ref[...], preferred_element_type=jnp.float32)
    logits_ref[...] = logits.astype(logits_ref.dtype)

    # Global vocab column index of each lane in this block.
    col = jax.lax.broadcasted_iota(jnp.int32, logits.shape, 1) + v * tv
    if vocab_size % tv != 0:
        # Mask padded vocab columns out of the logsumexp (static no-op when
        # the vocab is already a multiple of the vocab tile).
        logits_lse = jnp.where(col < vocab_size, logits, -jnp.inf)
    else:
        logits_lse = logits

    y = y_ref[...]  # (TN, 1) int32

    # Online logsumexp across vocab blocks.
    m_prev = m_scr[...]
    m_new = jnp.maximum(m_prev, jnp.max(logits_lse, axis=-1, keepdims=True))
    alpha = jnp.exp(m_prev - m_new)
    l_scr[...] = alpha * l_scr[...] + jnp.sum(
        jnp.exp(logits_lse - m_new), axis=-1, keepdims=True)
    m_scr[...] = m_new

    # Target-logit gather: each token's target lies in exactly one vocab block,
    # so a masked sum accumulated over blocks recovers logits[token, y].
    tgt_scr[...] = tgt_scr[...] + jnp.sum(
        jnp.where(col == y, logits, 0.0), axis=-1, keepdims=True)

    @pl.when(v == nv - 1)
    def _finalize():
        lse = m_scr[...] + jnp.log(l_scr[...])
        valid = (y != 0).astype(jnp.float32)            # ignore_index = 0
        loss_ref[...] = (lse - tgt_scr[...]) * valid
        valid_ref[...] = valid


def mlm_head_forward(x, y, w_t, *, token_tile=256, vocab_tile=2048,
                     logits_dtype=jnp.float32):
    """x: (B, S, E) f32, y: (B, S) int, w_t: (E, V) f32 (transposed Linear weight).

    Returns (logits (B, S, V) in `logits_dtype`, scalar mean loss).
    """
    B, S, E = x.shape
    E_w, V = w_t.shape
    assert E == E_w
    N = B * S

    # Clamp tiles for small shapes; keep TPU tiling constraints satisfied
    # (block either a multiple of the native tile or equal to the full dim).
    tn = min(token_tile, _round_up(N, 8))
    tv = min(vocab_tile, _round_up(V, 128))
    n_pad = _round_up(N, tn)
    v_pad = _round_up(V, tv)

    x_flat = x.reshape(N, E).astype(jnp.bfloat16)
    y_flat = y.reshape(N, 1).astype(jnp.int32)
    w_bf16 = w_t.astype(jnp.bfloat16)

    if n_pad != N:
        x_flat = jnp.pad(x_flat, ((0, n_pad - N), (0, 0)))
        y_flat = jnp.pad(y_flat, ((0, n_pad - N), (0, 0)))  # label 0 -> ignored
    if v_pad != V:
        w_bf16 = jnp.pad(w_bf16, ((0, 0), (0, v_pad - V)))

    grid = (n_pad // tn, v_pad // tv)

    # Rough double-buffered working set -> scoped VMEM limit (default 16/32 MiB
    # is too small once the vocab/token tiles are sized for real shapes).
    block_bytes = 2 * (tn * E * 2 + E * tv * 2 + tn * 4 + tn * tv * 4 + 2 * tn * 4)
    block_bytes += 3 * tn * 4  # scratch
    vmem_limit = int(min(128 * 1024 * 1024, max(32 * 1024 * 1024, 2 * block_bytes)))

    kernel = functools.partial(mlm_head_kernel, vocab_size=V, tv=tv)

    logits_flat, loss_pt, valid_pt = pl.pallas_call(
        kernel,
        out_shape=(
            jax.ShapeDtypeStruct((n_pad, v_pad), logits_dtype),
            jax.ShapeDtypeStruct((n_pad, 1), jnp.float32),
            jax.ShapeDtypeStruct((n_pad, 1), jnp.float32),
        ),
        grid_spec=pltpu.PrefetchScalarGridSpec(
            num_scalar_prefetch=0,
            grid=grid,
            in_specs=[
                pl.BlockSpec((tn, E), lambda t, v: (t, 0)),   # x token tile
                pl.BlockSpec((E, tv), lambda t, v: (0, v)),   # weight vocab block
                pl.BlockSpec((tn, 1), lambda t, v: (t, 0)),   # labels tile
            ],
            out_specs=[
                pl.BlockSpec((tn, tv), lambda t, v: (t, v)),  # logits tile
                pl.BlockSpec((tn, 1), lambda t, v: (t, 0)),   # per-token loss*valid
                pl.BlockSpec((tn, 1), lambda t, v: (t, 0)),   # per-token valid
            ],
            scratch_shapes=[
                pltpu.VMEM((tn, 1), jnp.float32),  # running max
                pltpu.VMEM((tn, 1), jnp.float32),  # running sum of exp
                pltpu.VMEM((tn, 1), jnp.float32),  # target logit
            ],
        ),
        compiler_params=pltpu.CompilerParams(
            dimension_semantics=("parallel", "arbitrary"),
            vmem_limit_bytes=vmem_limit,
        ),
    )(x_flat, w_bf16, y_flat)

    logits = logits_flat[:N, :V].reshape(B, S, V)
    # Padded tokens contribute 0 to both sums (their label is 0 -> ignored).
    # PyTorch returns nan when no valid tokens; 0/0 does the same here.
    loss = jnp.sum(loss_pt) / jnp.sum(valid_pt)
    return logits, loss


def reference_forward(x, y, w_t):
    """Pure-JAX reference matching F.cross_entropy(..., ignore_index=0),
    with the same bf16-input / f32-accumulation matmul as the kernel."""
    B, S, E = x.shape
    V = w_t.shape[1]
    logits = jnp.dot(x.reshape(-1, E).astype(jnp.bfloat16),
                     w_t.astype(jnp.bfloat16),
                     preferred_element_type=jnp.float32)
    lse = jax.scipy.special.logsumexp(logits, axis=-1)
    yf = y.reshape(-1)
    tgt = jnp.take_along_axis(logits, yf[:, None], axis=-1)[:, 0]
    valid = (yf != 0).astype(jnp.float32)
    loss = jnp.sum((lse - tgt) * valid) / jnp.sum(valid)
    return logits.reshape(B, S, V), loss


if __name__ == "__main__":
    # Small config consistent with the module: embed_size=32, vocab_size=128.
    B, S, E, V = 2, 8, 32, 128

    key = jax.random.PRNGKey(0)
    kx, ky, kw = jax.random.split(key, 3)

    x = jax.random.normal(kx, (B, S, E), dtype=jnp.float32)
    # Labels in [0, V); 0 is the ignore_index, force a few zeros deterministically.
    y = jax.random.randint(ky, (B, S), 0, V, dtype=jnp.int32)
    y = y.at[0, 0].set(0).at[1, 3].set(0)

    # Deterministic nn.Linear(E, V, bias=False)-style init: U(-1/sqrt(E), 1/sqrt(E)).
    bound = 1.0 / (E ** 0.5)
    w = jax.random.uniform(kw, (V, E), dtype=jnp.float32, minval=-bound, maxval=bound)
    w_t = w.T  # (E, V) lane-dense layout used by the kernel

    logits, loss = mlm_head_forward(x, y, w_t)
    jax.block_until_ready((logits, loss))

    # Sanity check against pure-JAX reference (same bf16 matmul precision).
    ref_logits, ref_loss = reference_forward(x, y, w_t)
    assert jnp.allclose(logits, ref_logits, atol=1e-3, rtol=1e-3), (
        float(jnp.max(jnp.abs(logits - ref_logits))))
    assert jnp.allclose(loss, ref_loss, atol=1e-3, rtol=1e-3), (
        float(loss), float(ref_loss))

    print("KERNEL_OK")
</pallas_src>

<mosaic_0001>
module attributes {stable_mosaic.version = 11 : i64} {
  func.func @mlm_head_kernel(%arg0: i32, %arg1: i32, %arg2: memref<16x32xbf16, #tpu.memory_space<vmem>>, %arg3: memref<32x128xbf16, #tpu.memory_space<vmem>>, %arg4: memref<16x1xi32, #tpu.memory_space<vmem>>, %arg5: memref<16x128xf32, #tpu.memory_space<vmem>>, %arg6: memref<16x1xf32, #tpu.memory_space<vmem>>, %arg7: memref<16x1xf32, #tpu.memory_space<vmem>>, %arg8: memref<16x1xf32, #tpu.memory_space<vmem>>, %arg9: memref<16x1xf32, #tpu.memory_space<vmem>>, %arg10: memref<16x1xf32, #tpu.memory_space<vmem>>) attributes {dimension_semantics = [#tpu.dimension_semantics<parallel>, #tpu.dimension_semantics<arbitrary>], iteration_bounds = array<i64: 1, 1>, scalar_prefetch = 0 : i64, scratch_operands = 3 : i64, tpu.core_type = #tpu.core_type<tc>, window_params = [{transform_indices = @transform_0, window_bounds = array<i64: 16, 32>}, {transform_indices = @transform_1, window_bounds = array<i64: 32, 128>}, {transform_indices = @transform_2, window_bounds = array<i64: 16, 1>}, {transform_indices = @transform_3, window_bounds = array<i64: 16, 128>}, {transform_indices = @transform_4, window_bounds = array<i64: 16, 1>}, {transform_indices = @transform_5, window_bounds = array<i64: 16, 1>}]} {
    %c0_i32 = arith.constant 0 : i32
    %0 = arith.cmpi eq, %arg1, %c0_i32 : i32
    %1 = arith.extui %0 : i1 to i32
    %c0_i32_0 = arith.constant 0 : i32
    %2 = arith.cmpi ne, %1, %c0_i32_0 : i32
    scf.if %2 {
      %cst_26 = arith.constant 0xFF800000 : f32
      %40 = vector.broadcast %cst_26 : f32 to vector<16x1xf32>
      %c0_27 = arith.constant 0 : index
      %c0_28 = arith.constant 0 : index
      %41 = vector.load %arg8[%c0_27, %c0_28] : memref<16x1xf32, #tpu.memory_space<vmem>>, vector<16x1xf32>
      tpu.vector_store %arg8[%c0_27, %c0_28], %40 {strides = array<i32>} : memref<16x1xf32, #tpu.memory_space<vmem>>, vector<16x1xf32>,
      %cst_29 = arith.constant 0.000000e+00 : f32
      %42 = vector.broadcast %cst_29 : f32 to vector<16x1xf32>
      %c0_30 = arith.constant 0 : index
      %c0_31 = arith.constant 0 : index
      %43 = vector.load %arg9[%c0_30, %c0_31] : memref<16x1xf32, #tpu.memory_space<vmem>>, vector<16x1xf32>
      tpu.vector_store %arg9[%c0_30, %c0_31], %42 {strides = array<i32>} : memref<16x1xf32, #tpu.memory_space<vmem>>, vector<16x1xf32>,
      %cst_32 = arith.constant 0.000000e+00 : f32
      %44 = vector.broadcast %cst_32 : f32 to vector<16x1xf32>
      %c0_33 = arith.constant 0 : index
      %c0_34 = arith.constant 0 : index
      %45 = vector.load %arg10[%c0_33, %c0_34] : memref<16x1xf32, #tpu.memory_space<vmem>>, vector<16x1xf32>
      tpu.vector_store %arg10[%c0_33, %c0_34], %44 {strides = array<i32>} : memref<16x1xf32, #tpu.memory_space<vmem>>, vector<16x1xf32>,
    } else {
    }
    %c0 = arith.constant 0 : index
    %c0_1 = arith.constant 0 : index
    %3 = vector.load %arg2[%c0, %c0_1] : memref<16x32xbf16, #tpu.memory_space<vmem>>, vector<16x32xbf16>
    %c0_2 = arith.constant 0 : index
    %c0_3 = arith.constant 0 : index
    %4 = vector.load %arg3[%c0_2, %c0_3] : memref<32x128xbf16, #tpu.memory_space<vmem>>, vector<32x128xbf16>
    %cst = arith.constant dense<0.000000e+00> : vector<16x128xf32>
    %5 = tpu.matmul %3, %4, %cst {dimension_numbers = #tpu.dot_dimension_numbers<[1], [0], [0], [1], [0, 0, 1, 1], [], []>} : vector<16x32xbf16>, vector<32x128xbf16>, vector<16x128xf32> -> vector<16x128xf32>
    %c0_4 = arith.constant 0 : index
    %c0_5 = arith.constant 0 : index
    %6 = vector.load %arg5[%c0_4, %c0_5] : memref<16x128xf32, #tpu.memory_space<vmem>>, vector<16x128xf32>
    tpu.vector_store %arg5[%c0_4, %c0_5], %5 {strides = array<i32>} : memref<16x128xf32, #tpu.memory_space<vmem>>, vector<16x128xf32>,
    %7 = tpu.iota {dimensions = array<i32: 1>} : vector<16x128xi32>
    %c128_i32 = arith.constant 128 : i32
    %8 = arith.muli %arg1, %c128_i32 : i32
    %9 = vector.broadcast %8 : i32 to vector<16x128xi32>
    %10 = arith.addi %7, %9 : vector<16x128xi32>
    %c0_6 = arith.constant 0 : index
    %c0_7 = arith.constant 0 : index
    %11 = vector.load %arg4[%c0_6, %c0_7] : memref<16x1xi32, #tpu.memory_space<vmem>>, vector<16x1xi32>
    %c0_8 = arith.constant 0 : index
    %c0_9 = arith.constant 0 : index
    %12 = vector.load %arg8[%c0_8, %c0_9] : memref<16x1xf32, #tpu.memory_space<vmem>>, vector<16x1xf32>
    %cst_10 = arith.constant dense<0xFF800000> : vector<16xf32>
    %13 = vector.multi_reduction <maximumf>, %5, %cst_10 [1] : vector<16x128xf32> to vector<16xf32>
    %14 = vector.shape_cast %13 : vector<16xf32> to vector<16x1xf32>
    %15 = arith.maximumf %12, %14 : vector<16x1xf32>
    %16 = arith.subf %12, %15 : vector<16x1xf32>
    %17 = math.exp %16 : vector<16x1xf32>
    %c0_11 = arith.constant 0 : index
    %c0_12 = arith.constant 0 : index
    %18 = vector.load %arg9[%c0_11, %c0_12] : memref<16x1xf32, #tpu.memory_space<vmem>>, vector<16x1xf32>
    %19 = arith.mulf %17, %18 : vector<16x1xf32>
    %20 = vector.broadcast %15 : vector<16x1xf32> to vector<16x128xf32>
    %21 = arith.subf %5, %20 : vector<16x128xf32>
    %22 = math.exp %21 : vector<16x128xf32>
    %cst_13 = arith.constant dense<0.000000e+00> : vector<16xf32>
    %23 = vector.multi_reduction <add>, %22, %cst_13 [1] : vector<16x128xf32> to vector<16xf32>
    %24 = vector.shape_cast %23 : vector<16xf32> to vector<16x1xf32>
    %25 = arith.addf %19, %24 : vector<16x1xf32>
    %c0_14 = arith.constant 0 : index
    %c0_15 = arith.constant 0 : index
    %26 = vector.load %arg9[%c0_14, %c0_15] : memref<16x1xf32, #tpu.memory_space<vmem>>, vector<16x1xf32>
    tpu.vector_store %arg9[%c0_14, %c0_15], %25 {strides = array<i32>} : memref<16x1xf32, #tpu.memory_space<vmem>>, vector<16x1xf32>,
    %c0_16 = arith.constant 0 : index
    %c0_17 = arith.constant 0 : index
    %27 = vector.load %arg8[%c0_16, %c0_17] : memref<16x1xf32, #tpu.memory_space<vmem>>, vector<16x1xf32>
    tpu.vector_store %arg8[%c0_16, %c0_17], %15 {strides = array<i32>} : memref<16x1xf32, #tpu.memory_space<vmem>>, vector<16x1xf32>,
    %c0_18 = arith.constant 0 : index
    %c0_19 = arith.constant 0 : index
    %28 = vector.load %arg10[%c0_18, %c0_19] : memref<16x1xf32, #tpu.memory_space<vmem>>, vector<16x1xf32>
    %29 = vector.broadcast %11 : vector<16x1xi32> to vector<16x128xi32>
    %30 = arith.cmpi eq, %10, %29 : vector<16x128xi32>
    %cst_20 = arith.constant 0.000000e+00 : f32
    %31 = vector.broadcast %cst_20 : f32 to vector<16x128xf32>
    %32 = arith.select %30, %5, %31 : vector<16x128xi1>, vector<16x128xf32>
    %cst_21 = arith.constant dense<0.000000e+00> : vector<16xf32>
    %33 = vector.multi_reduction <add>, %32, %cst_21 [1] : vector<16x128xf32> to vector<16xf32>
    %34 = vector.shape_cast %33 : vector<16xf32> to vector<16x1xf32>
    %35 = arith.addf %28, %34 : vector<16x1xf32>
    %c0_22 = arith.constant 0 : index
    %c0_23 = arith.constant 0 : index
    %36 = vector.load %arg10[%c0_22, %c0_23] : memref<16x1xf32, #tpu.memory_space<vmem>>, vector<16x1xf32>
    tpu.vector_store %arg10[%c0_22, %c0_23], %35 {strides = array<i32>} : memref<16x1xf32, #tpu.memory_space<vmem>>, vector<16x1xf32>,
    %c0_i32_24 = arith.constant 0 : i32
    %37 = arith.cmpi eq, %arg1, %c0_i32_24 : i32
    %38 = arith.extui %37 : i1 to i32
    %c0_i32_25 = arith.constant 0 : i32
    %39 = arith.cmpi ne, %38, %c0_i32_25 : i32
    scf.if %39 {
      %c0_26 = arith.constant 0 : index
      %c0_27 = arith.constant 0 : index
      %40 = vector.load %arg8[%c0_26, %c0_27] : memref<16x1xf32, #tpu.memory_space<vmem>>, vector<16x1xf32>
      %c0_28 = arith.constant 0 : index
      %c0_29 = arith.constant 0 : index
      %41 = vector.load %arg9[%c0_28, %c0_29] : memref<16x1xf32, #tpu.memory_space<vmem>>, vector<16x1xf32>
      %42 = math.log %41 : vector<16x1xf32>
      %43 = arith.addf %40, %42 : vector<16x1xf32>
      %c0_i32_30 = arith.constant 0 : i32
      %44 = vector.broadcast %c0_i32_30 : i32 to vector<16x1xi32>
      %45 = arith.cmpi ne, %11, %44 : vector<16x1xi32>
      %46 = arith.extui %45 : vector<16x1xi1> to vector<16x1xi32>
      %47 = arith.sitofp %46 : vector<16x1xi32> to vector<16x1xf32>
      %c0_31 = arith.constant 0 : index
      %c0_32 = arith.constant 0 : index
      %48 = vector.load %arg10[%c0_31, %c0_32] : memref<16x1xf32, #tpu.memory_space<vmem>>, vector<16x1xf32>
      %49 = arith.subf %43, %48 : vector<16x1xf32>
      %50 = arith.mulf %49, %47 : vector<16x1xf32>
      %c0_33 = arith.constant 0 : index
      %c0_34 = arith.constant 0 : index
      %51 = vector.load %arg6[%c0_33, %c0_34] : memref<16x1xf32, #tpu.memory_space<vmem>>, vector<16x1xf32>
      tpu.vector_store %arg6[%c0_33, %c0_34], %50 {strides = array<i32>} : memref<16x1xf32, #tpu.memory_space<vmem>>, vector<16x1xf32>,
      %c0_35 = arith.constant 0 : index
      %c0_36 = arith.constant 0 : index
      %52 = vector.load %arg7[%c0_35, %c0_36] : memref<16x1xf32, #tpu.memory_space<vmem>>, vector<16x1xf32>
      tpu.vector_store %arg7[%c0_35, %c0_36], %47 {strides = array<i32>} : memref<16x1xf32, #tpu.memory_space<vmem>>, vector<16x1xf32>,
    } else {
    }
    return
  }
  func.func @transform_0(%arg0: i32, %arg1: i32) -> (i32, i32) {
    %c0_i32 = arith.constant 0 : i32
    %c0_i32_0 = arith.constant 0 : i32
    return %arg0, %c0_i32 : i32, i32
  }
  func.func @transform_1(%arg0: i32, %arg1: i32) -> (i32, i32) {
    %c0_i32 = arith.constant 0 : i32
    %c0_i32_0 = arith.constant 0 : i32
    return %c0_i32, %arg1 : i32, i32
  }
  func.func @transform_2(%arg0: i32, %arg1: i32) -> (i32, i32) {
    %c0_i32 = arith.constant 0 : i32
    %c0_i32_0 = arith.constant 0 : i32
    return %arg0, %c0_i32 : i32, i32
  }
  func.func @transform_3(%arg0: i32, %arg1: i32) -> (i32, i32) {
    %c0_i32 = arith.constant 0 : i32
    return %arg0, %arg1 : i32, i32
  }
  func.func @transform_4(%arg0: i32, %arg1: i32) -> (i32, i32) {
    %c0_i32 = arith.constant 0 : i32
    %c0_i32_0 = arith.constant 0 : i32
    return %arg0, %c0_i32 : i32, i32
  }
  func.func @transform_5(%arg0: i32, %arg1: i32) -> (i32, i32) {
    %c0_i32 = arith.constant 0 : i32
    %c0_i32_0 = arith.constant 0 : i32
    return %arg0, %c0_i32 : i32, i32
  }
}

</mosaic_0001>

<llo_original>
// kernel: tpu_custom_call.1
$region0: #{tpu_custom_call.1}
  #allocation0 [shape = 'u32[]', space=smem, size = 0x4, offset = 0x4, fixed_abs, tag = 'smem constant byte address 0x4 - core index']
  #allocation1 [shape = 'u32[144,128]{1,0:T(1,128)}', space=vmem, size = 0x12000, scoped, tag = 'internal scratch']
  #allocation2 [shape = 'f32[16,1]{1,0:T(8,128)}', space=vmem, size = 0x2000, scoped, tag = 'scratch operand']
  #allocation3 [shape = 'f32[16,1]{1,0:T(8,128)}', space=vmem, size = 0x2000, scoped, tag = 'scratch operand']
  #allocation4 [shape = 'f32[16,1]{1,0:T(8,128)}', space=vmem, size = 0x2000, scoped, tag = 'scratch operand']
  %s0 = inlined_call_operand.hbm [shape: bf16[16,32], index: 0, kind: input, shape index: {}]
  %s1 = inlined_call_operand.vmem [shape: bf16[32,128], index: 1, kind: input, shape index: {}]
  %s2 = inlined_call_operand.vmem [shape: s32[16,1], index: 2, kind: input, shape index: {}]
  %s3 = inlined_call_operand.hbm [shape: f32[16,128], index: 3, kind: output, shape index: {0}]
  %s4 = inlined_call_operand.vmem [shape: f32[16,1], index: 4, kind: output, shape index: {1}]
  %s5 = inlined_call_operand.vmem [shape: f32[16,1], index: 5, kind: output, shape index: {2}]
  %6 = xla_tuple %s3, %s4, %s5
  %s7 = sld [smem:[#allocation0]]
  $region50: #{tpu_custom_call.1} parent=0
    _
  %s9 = ssub.s32 1, %s7
  %s10 = scalar_select 0, %s9, %s7
  $region1: #{tpu_custom_call.1} parent=0
    #allocation5 [shape = 'u8[4096]{0}', space=vmem, size = 0x1000, scoped, tag = 'input window, operand 0, single buffered']
    #allocation6 [shape = 's32[1]{0}', space=sflag, size = 0x4, scoped, tag = 'scoped memory for tpu_custom_call.1']
    #allocation7 [shape = 's32[1]{0}', space=sflag, size = 0x4, scoped, tag = 'scoped memory for tpu_custom_call.1']
    #allocation8 [shape = 'u8[8192]{0}', space=vmem, size = 0x2000, scoped, tag = 'output window, operand 0, single buffered']
    %11 = vsyncpa [#allocation6], 0
    %12 = vsyncpa [#allocation7], 0
    // Predicated region
    $region2: #{tpu_custom_call.1} parent=1 // pred_check
      _
    $region3: #{tpu_custom_call.1} parent=1 // pred_check_branch
      %14 = sbr.rel (0) target = $region5
    $region4: #{tpu_custom_call.1} parent=1 // pred_region
      %s16 = ssub.s32 128, 128
      %17 = vsyncadd [#allocation6], %s16
      %s18 = sshll.u32 [#allocation5], 4
      %s19 = int_to_ptr.vmem [resolvable:$true] %s18
      %24 = dma.hbm_to_vmem [thread:$0]  %s0, 128, %s19, [#allocation6], 64, 64, 4
    $region5: #{tpu_custom_call.1} parent=1 // pred_fallthru
      _
    // Predicated region
    $region6: #{tpu_custom_call.1} parent=1 // pred_check
      _
    $region7: #{tpu_custom_call.1} parent=1 // pred_check_branch
      %26 = sbr.rel (0) target = $region9
    $region8: #{tpu_custom_call.1} parent=1 // pred_region
      _
    $region9: #{tpu_custom_call.1} parent=1 // pred_fallthru
      _
    // Predicated region
    $region10: #{tpu_custom_call.1} parent=1 // pred_check
      _
    $region11: #{tpu_custom_call.1} parent=1 // pred_check_branch
      %28 = sbr.rel (0) target = $region13
    $region12: #{tpu_custom_call.1} parent=1 // pred_region
      _
    $region13: #{tpu_custom_call.1} parent=1 // pred_fallthru
      _
    // Predicated region
    $region14: #{tpu_custom_call.1} parent=1 // pred_check
      _
    $region15: #{tpu_custom_call.1} parent=1 // pred_check_branch
      %30 = sbr.rel (0) target = $region17
    $region16: #{tpu_custom_call.1} parent=1 // pred_region
      %31 = dma.done [#allocation6], 128
    $region17: #{tpu_custom_call.1} parent=1 // pred_fallthru
      _
    %p33 = scmp.eq.s32.totalorder 0, 0
    // Predicated region
    $region18: #{tpu_custom_call.1} parent=1 // pred_check
      %p34 = pneg %p33
    $region19: #{tpu_custom_call.1} parent=1 // pred_check_branch
      %36 = sbr.rel (%p34) target = $region21
    $region20: #{tpu_custom_call.1} parent=1 // pred_region
      %vm37 = vcmask 7168
      %38 = vst.msk [vmem:[#allocation2] sm:$0xff] %vm37, -inf
      %39 = vst.msk [vmem:[#allocation2 + $0x8] sm:$0xff] %vm37, -inf
      %40 = vst.msk [vmem:[#allocation3] sm:$0xff] %vm37, 0.0
      %41 = vst.msk [vmem:[#allocation3 + $0x8] sm:$0xff] %vm37, 0.0
      %42 = vst.msk [vmem:[#allocation4] sm:$0xff] %vm37, 0.0
      %43 = vst.msk [vmem:[#allocation4 + $0x8] sm:$0xff] %vm37, 0.0
    $region21: #{tpu_custom_call.1} parent=1 // pred_fallthru
      _
    %v44 = vld [vmem:[#allocation5] sm:$0xf]
    %v45 = vld [vmem:[#allocation5 + $0x4] sm:$0xf]
    %v46 = vld [vmem:[%s1] sm:$0xf]
    %v47 = vld [vmem:[%s1 + $0x4] sm:$0xf]
    %v48 = vld [vmem:[%s1 + $0x8] sm:$0xf]
    %v49 = vld [vmem:[%s1 + $0xc] sm:$0xf]
    %v52 = vunpack.c.l.b16 %v44
    %v53 = vunpack.c.l.b16 %v45
    %v54 = vpack.c.b16 %v53, %v52
    %v59 = vunpack.c.l.b16 %v46
    %v60 = vunpack.c.l.b16 %v47
    %v61 = vunpack.c.l.b16 %v48
    %v62 = vunpack.c.l.b16 %v49
    %v63 = vpack.c.b16 %v60, %v59
    %v64 = vpack.c.b16 %v62, %v61
    %vm67 = vcmask 261120
    %v69 = vsel %vm67, %v54, 0
    %71 = vmatprep.subr.bf16.mxu0 0
    %72 = vmatpush1.bf16.msra.mxu0 %v63
    %73 = vmatprep.subr.bf16.mxu0 0
    %74 = vmatpush1.bf16.msra.mxu0 %v64
    %75 = vmatprep.subr.bf16.mxu0 0
    %76 = vmatpush1.bf16.msra.mxu0 0
    %77 = vmatprep.subr.bf16.mxu0 0
    %78 = vmatpush1.bf16.msra.mxu0 0
    %79 = vmatprep.subr.bf16.mxu0 0
    %80 = vmatpush1.bf16.msra.mxu0 0
    %81 = vmatprep.subr.bf16.mxu0 0
    %82 = vmatpush1.bf16.msra.mxu0 0
    %83 = vmatprep.subr.bf16.mxu0 0
    %84 = vmatpush1.bf16.msra.mxu0 0
    %85 = vmatprep.subr.bf16.mxu0 0
    %86 = vmatpush1.bf16.msra.mxu0 0
    %87 = vmatprep.subr.bf16.mxu0 0
    %88 = vmatpush1.bf16.msra.mxu0 0
    %89 = vmatprep.subr.bf16.mxu0 0
    %90 = vmatpush1.bf16.msra.mxu0 0
    %91 = vmatprep.subr.bf16.mxu0 0
    %92 = vmatpush1.bf16.msra.mxu0 0
    %93 = vmatprep.subr.bf16.mxu0 0
    %94 = vmatpush1.bf16.msra.mxu0 0
    %95 = vmatprep.subr.bf16.mxu0 0
    %96 = vmatpush1.bf16.msra.mxu0 0
    %97 = vmatprep.subr.bf16.mxu0 0
    %98 = vmatpush1.bf16.msra.mxu0 0
    %99 = vmatprep.subr.bf16.mxu0 0
    %100 = vmatpush1.bf16.msra.mxu0 0
    %101 = vmatprep.subr.bf16.mxu0 0
    %102 = vmatpush1.bf16.msra.mxu0 0
    %103 = vmatprep.mubr.bf16.mxu0 0
    %104 = vmatmul.mubr.bf16.gmra.mrb[0].mxu0 %v69
    %v105 = vpop.f32.mrb[0].mxu0
    %v106 = vadd.f32 0.0, %v105
    %v107 = vpop.f32.mrb[0].mxu0
    %v108 = vpop.f32.mrb[0].mxu0
    %v109 = vadd.f32 0.0, %v108
    %v110 = vpop.f32.mrb[0].mxu0
    %111 = vdwg.mxu0
    %112 = vst [vmem:[#allocation8] sm:$0xff] %v106
    %113 = vst [vmem:[#allocation8 + $0x8] sm:$0xff] %v109
    %v114 = vlaneseq
    %v115 = vand.u32 %v114, 127
    %s116 = smul.u32 0, 128
    %v117 = vstv %s116
    %v118 = vadd.s32 %v115, %v117
    %v119 = vld [vmem:[%s2] sm:$0xff]
    %v120 = vld [vmem:[%s2 + $0x8] sm:$0xff]
    %v121 = vld [vmem:[#allocation2] sm:$0xff]
    %v122 = vld [vmem:[#allocation2 + $0x8] sm:$0xff]
    %123 = vmax.xlane.f32.xlu0 %v106
    %v124 = vpop.xlane.xlu0 %123
    %125 = vmax.xlane.f32.xlu0 %v109
    %v126 = vpop.xlane.xlu0 %125
    %v127 = vmax.f32 %v121, %v124
    %v128 = vmax.f32 %v122, %v126
    %v129 = vsub.f32 %v121, %v127
    %v130 = vsub.f32 %v122, %v128
    %v131 = vmul.f32 %v129, 1.442695
    %v132 = vpow.pop %v131
    %v133 = vmul.f32 %v130, 1.442695
    %v134 = vpow.pop %v133
    %v135 = vld [vmem:[#allocation3] sm:$0xff]
    %v136 = vld [vmem:[#allocation3 + $0x8] sm:$0xff]
    %v137 = vmul.f32 %v132, %v135
    %v138 = vmul.f32 %v134, %v136
    %140 = vset.pattern.permute.xlu0 0
    %141 = vperm.xlu0 %140, %v127
    %v142 = vpop.permute.xlu0 %141
    %145 = vset.pattern.permute.xlu0 0
    %146 = vperm.xlu0 %145, %v128
    %v147 = vpop.permute.xlu0 %146
    %v149 = vsub.f32 %v106, %v142
    %v150 = vsub.f32 %v109, %v147
    %v151 = vmul.f32 %v149, 1.442695
    %v152 = vpow.pop %v151
    %v153 = vmul.f32 %v150, 1.442695
    %v154 = vpow.pop %v153
    %155 = vadd.xlane.f32.xlu0 %v152
    %v156 = vpop.xlane.xlu0 %155
    %157 = vadd.xlane.f32.xlu0 %v154
    %v158 = vpop.xlane.xlu0 %157
    %v159 = vadd.f32 %v137, %v156
    %v160 = vadd.f32 %v138, %v158
    %vm161 = vcmask 7168
    %162 = vst.msk [vmem:[#allocation3] sm:$0xff] %vm161, %v159
    %163 = vst.msk [vmem:[#allocation3 + $0x8] sm:$0xff] %vm161, %v160
    %164 = vst.msk [vmem:[#allocation2] sm:$0xff] %vm161, %v127
    %165 = vst.msk [vmem:[#allocation2 + $0x8] sm:$0xff] %vm161, %v128
    %v166 = vld [vmem:[#allocation4] sm:$0xff]
    %v167 = vld [vmem:[#allocation4 + $0x8] sm:$0xff]
    %168 = vset.pattern.permute.xlu0 0
    %169 = vperm.xlu0 %168, %v119
    %v170 = vpop.permute.xlu0 %169
    %171 = vset.pattern.permute.xlu0 0
    %172 = vperm.xlu0 %171, %v120
    %v173 = vpop.permute.xlu0 %172
    %vm174 = vcmp.eq.s32.totalorder %v118, %v170
    %vm175 = vcmp.eq.s32.totalorder %v118, %v173
    %v176 = vsel %vm174, %v106, 0.0
    %v177 = vsel %vm175, %v109, 0.0
    %178 = vadd.xlane.f32.xlu0 %v176
    %v179 = vpop.xlane.xlu0 %178
    %180 = vadd.xlane.f32.xlu0 %v177
    %v181 = vpop.xlane.xlu0 %180
    %v182 = vadd.f32 %v166, %v179
    %v183 = vadd.f32 %v167, %v181
    %184 = vst.msk [vmem:[#allocation4] sm:$0xff] %vm161, %v182
    %185 = vst.msk [vmem:[#allocation4 + $0x8] sm:$0xff] %vm161, %v183
    // Predicated region
    $region22: #{tpu_custom_call.1} parent=1 // pred_check
      %p186 = pneg %p33
    $region23: #{tpu_custom_call.1} parent=1 // pred_check_branch
      %188 = sbr.rel (%p186) target = $region25
    $region24: #{tpu_custom_call.1} parent=1 // pred_region
      %v189 = vld [vmem:[#allocation2] sm:$0xff]
      %v190 = vld [vmem:[#allocation2 + $0x8] sm:$0xff]
      %v191 = vld [vmem:[#allocation3] sm:$0xff]
      %v192 = vld [vmem:[#allocation3 + $0x8] sm:$0xff]
      %v193 = vlog2.pop %v191
      %v194 = vmul.f32 %v193, 0.6931472
      %v195 = vlog2.pop %v192
      %v196 = vmul.f32 %v195, 0.6931472
      %v197 = vadd.f32 %v189, %v194
      %v198 = vadd.f32 %v190, %v196
      %vm199 = vcmp.ne.s32.totalorder %v119, 0
      %vm200 = vcmp.ne.s32.totalorder %v120, 0
      %v201 = vsel %vm199, 1, 0
      %v202 = vsel %vm200, 1, 0
      %v203 = vcvt.s32.f32 %v201
      %v204 = vcvt.s32.f32 %v202
      %v205 = vld [vmem:[#allocation4] sm:$0xff]
      %v206 = vld [vmem:[#allocation4 + $0x8] sm:$0xff]
      %v207 = vsub.f32 %v197, %v205
      %v208 = vsub.f32 %v198, %v206
      %v209 = vmul.f32 %v207, %v203
      %v210 = vmul.f32 %v208, %v204
      %211 = vst.msk [vmem:[%s4] sm:$0xff] %vm161, %v209
      %212 = vst.msk [vmem:[%s4 + $0x8] sm:$0xff] %vm161, %v210
      %213 = vst.msk [vmem:[%s5] sm:$0xff] %vm161, %v203
      %214 = vst.msk [vmem:[%s5 + $0x8] sm:$0xff] %vm161, %v204
    $region25: #{tpu_custom_call.1} parent=1 // pred_fallthru
      _
    // Predicated region
    $region26: #{tpu_custom_call.1} parent=1 // pred_check
      _
    $region27: #{tpu_custom_call.1} parent=1 // pred_check_branch
      %216 = sbr.rel (0) target = $region29
    $region28: #{tpu_custom_call.1} parent=1 // pred_region
      %s218 = ssub.s32 256, 256
      %219 = vsyncadd [#allocation7], %s218
      %s220 = sshll.u32 [#allocation8], 4
      %s221 = int_to_ptr.vmem [resolvable:$true] %s220
      %226 = dma.vmem_to_hbm [thread:$0]  %s221, 256, %s3, [#allocation7], 128, 128, 8
    $region29: #{tpu_custom_call.1} parent=1 // pred_fallthru
      _
    // Predicated region
    $region30: #{tpu_custom_call.1} parent=1 // pred_check
      _
    $region31: #{tpu_custom_call.1} parent=1 // pred_check_branch
      %228 = sbr.rel (0) target = $region33
    $region32: #{tpu_custom_call.1} parent=1 // pred_region
      _
    $region33: #{tpu_custom_call.1} parent=1 // pred_fallthru
      _
    // Predicated region
    $region34: #{tpu_custom_call.1} parent=1 // pred_check
      _
    $region35: #{tpu_custom_call.1} parent=1 // pred_check_branch
      %230 = sbr.rel (0) target = $region37
    $region36: #{tpu_custom_call.1} parent=1 // pred_region
      _
    $region37: #{tpu_custom_call.1} parent=1 // pred_fallthru
      _
    // Predicated region
    $region38: #{tpu_custom_call.1} parent=1 // pred_check
      _
    $region39: #{tpu_custom_call.1} parent=1 // pred_check_branch
      %232 = sbr.rel (0) target = $region41
    $region40: #{tpu_custom_call.1} parent=1 // pred_region
      %233 = dma.done [#allocation7], 256
    $region41: #{tpu_custom_call.1} parent=1 // pred_fallthru
      _
    // Predicated region
    $region42: #{tpu_custom_call.1} parent=1 // pred_check
      _
    $region43: #{tpu_custom_call.1} parent=1 // pred_check_branch
      %235 = sbr.rel (0) target = $region45
    $region44: #{tpu_custom_call.1} parent=1 // pred_region
      _
    $region45: #{tpu_custom_call.1} parent=1 // pred_fallthru
      _
    // Predicated region
    $region46: #{tpu_custom_call.1} parent=1 // pred_check
      _
    $region47: #{tpu_custom_call.1} parent=1 // pred_check_branch
      %237 = sbr.rel (0) target = $region49
    $region48: #{tpu_custom_call.1} parent=1 // pred_region
      _
    $region49: #{tpu_custom_call.1} parent=1 // pred_fallthru
      _
    %238 = vsyncpa [#allocation6], 1
    %239 = vsyncpa [#allocation7], 1

</llo_original>
